<compile_context>
chip_gen: v7x
topology: tpu7x:2x2x1
jax: 0.10.0
libtpu: 0.0.40
codegen_flags: <defaults>
</compile_context>

<pallas_src>
import functools

import numpy as np
import jax
import jax.numpy as jnp
from jax.experimental import pallas as pl
from jax.experimental.pallas import tpu as pltpu


# ----------------------------- Pallas kernel --------------------------------
def rvtdcnn_kernel(x_ref, wconv_ref, w12_ref, bias_ref, out_ref, *, n_feat):
    # conv (im2col folded into the weight) as one MXU matmul, f32 accumulation
    h = jnp.dot(x_ref[...], wconv_ref[...],
                preferred_element_type=jnp.float32)          # (tb, 18)
    h = jnp.tanh(h + bias_ref[:, :n_feat])                   # EUP tanh
    # fused fc1 @ fc2 (+ fused bias)
    out_ref[...] = jnp.dot(h.astype(jnp.bfloat16), w12_ref[...],
                           preferred_element_type=jnp.float32) \
        + bias_ref[:, n_feat:n_feat + 2]                      # (tb, 2)


# ------------------------------ trace-time helpers ---------------------------
def _round_up(n, m):
    return ((n + m - 1) // m) * m


def _placement_constant(H, W):
    """One-hot (H*W, Ho*Wo, 9) numpy constant: pixel -> (output position, tap)."""
    Ho, Wo = H - 2, W - 2
    place = np.zeros((H * W, Ho * Wo, 9), np.float32)
    for i in range(Ho):
        for j in range(Wo):
            hw = i * Wo + j
            for di in range(3):
                for dj in range(3):
                    place[(i + di) * W + (j + dj), hw, di * 3 + dj] = 1.0
    return place


# ------------------------------ JAX wrapper ----------------------------------
@functools.partial(jax.jit, static_argnames=("tile_b",))
def rvtdcnn_forward(x, conv_w, conv_b, fc1_w, fc1_b, fc2_w, fc2_b, *,
                    tile_b=8192):
    B, C, H, W = x.shape
    assert C == 1
    Ho, Wo = H - 2, W - 2
    n_pos = Ho * Wo                      # 6
    n_feat = 3 * n_pos                   # 18  (PyTorch x.view(-1, 18) order)
    n_pix = H * W                        # 20

    # ---- trace-time algebraic folds (single XLA ops, no scatter chains) ----
    place = jnp.asarray(_placement_constant(H, W))            # (20, 6, 9) const
    wc = conv_w.reshape(3, 9)
    # W_full[p, c*n_pos + hw] = sum_k place[p, hw, k] * wc[c, k]
    w_full = jnp.einsum("phk,ck->pch", place, wc).reshape(n_pix, n_feat)
    b_conv = jnp.repeat(conv_b, n_pos)                        # index c*n_pos+hw

    # fc1 -> fc2 fusion (no activation between them): exact f32 fold
    w12 = fc1_w.T @ fc2_w.T                                   # (18, 2)
    b12 = fc1_b @ fc2_w.T + fc2_b                             # (2,)
    biases = jnp.concatenate([b_conv, b12]).reshape(1, n_feat + 2)
    biases = biases.astype(jnp.float32)                       # (1, 20)

    # ---- flatten input, cast to bf16, pad batch to a tile multiple ----------
    x_flat = x.reshape(B, n_pix).astype(jnp.bfloat16)
    tb = min(tile_b, _round_up(B, 8))                         # sublane-aligned
    Bp = _round_up(B, tb)
    if Bp != B:
        x_flat = jnp.pad(x_flat, ((0, Bp - B), (0, 0)))

    kernel = functools.partial(rvtdcnn_kernel, n_feat=n_feat)

    out = pl.pallas_call(
        kernel,
        out_shape=jax.ShapeDtypeStruct((Bp, 2), jnp.float32),
        grid=(Bp // tb,),
        in_specs=[
            pl.BlockSpec((tb, n_pix), lambda i: (i, 0)),        # x tile
            pl.BlockSpec((n_pix, n_feat), lambda i: (0, 0)),    # W_full (full)
            pl.BlockSpec((n_feat, 2), lambda i: (0, 0)),        # W12 (full)
            pl.BlockSpec((1, n_feat + 2), lambda i: (0, 0)),    # biases (full)
        ],
        out_specs=pl.BlockSpec((tb, 2), lambda i: (i, 0)),
        compiler_params=pltpu.CompilerParams(
            dimension_semantics=("parallel",)),
    )(x_flat, w_full.astype(jnp.bfloat16), w12.astype(jnp.bfloat16), biases)
    # TODO(synk): for huge B, a transposed (2, B) lane-dense output layout would
    # avoid masked 2/128-lane stores; kept (B, 2) for simplicity here.
    return out[:B]


# ----------------------------- pure-JAX reference ----------------------------
def ref_forward(x, conv_w, conv_b, fc1_w, fc1_b, fc2_w, fc2_b):
    B = x.shape[0]
    Ho, Wo = x.shape[2] - 2, x.shape[3] - 2
    out = jnp.zeros((B, 3, Ho, Wo), jnp.float32)
    for c in range(3):
        acc = jnp.zeros((B, Ho, Wo), jnp.float32)
        for di in range(3):
            for dj in range(3):
                acc = acc + conv_w[c, 0, di, dj] * x[:, 0, di:di + Ho, dj:dj + Wo]
        out = out.at[:, c].set(acc + conv_b[c])
    h = jnp.tanh(out).reshape(B, 3 * Ho * Wo)      # PyTorch .view(-1, 18)
    h = h @ fc1_w.T + fc1_b
    return h @ fc2_w.T + fc2_b


# ---------------------------------- main -------------------------------------
if __name__ == "__main__":
    key = jax.random.PRNGKey(0)
    k_x, k_cw, k_cb, k_w1, k_b1, k_w2, k_b2 = jax.random.split(key, 7)

    # Input: NCHW with (4-2)*(5-2)=6 conv positions * 3 channels = 18 features,
    # matching the module's fc1 in_features=18.
    B = 8
    x = jax.random.normal(k_x, (B, 1, 4, 5), jnp.float32)

    # Deterministic parameter init (PyTorch-like uniform fan-in scaling).
    conv_w = jax.random.uniform(k_cw, (3, 1, 3, 3), jnp.float32, -1 / 3, 1 / 3)
    conv_b = jax.random.uniform(k_cb, (3,), jnp.float32, -1 / 3, 1 / 3)
    fc1_w = jax.random.uniform(k_w1, (10, 18), jnp.float32,
                               -1 / jnp.sqrt(18.0), 1 / jnp.sqrt(18.0))
    fc1_b = jax.random.uniform(k_b1, (10,), jnp.float32,
                               -1 / jnp.sqrt(18.0), 1 / jnp.sqrt(18.0))
    fc2_w = jax.random.uniform(k_w2, (2, 10), jnp.float32,
                               -1 / jnp.sqrt(10.0), 1 / jnp.sqrt(10.0))
    fc2_b = jax.random.uniform(k_b2, (2,), jnp.float32,
                               -1 / jnp.sqrt(10.0), 1 / jnp.sqrt(10.0))

    out = rvtdcnn_forward(x, conv_w, conv_b, fc1_w, fc1_b, fc2_w, fc2_b)
    out = jax.block_until_ready(out)

    ref = ref_forward(x, conv_w, conv_b, fc1_w, fc1_b, fc2_w, fc2_b)
    assert out.shape == (B, 2)
    # bf16 MXU inputs with f32 accumulation -> relaxed tolerance.
    assert jnp.allclose(out, ref, atol=3e-2, rtol=3e-2), (out, ref)

    print("KERNEL_OK")
</pallas_src>

<mosaic_0001>
module attributes {stable_mosaic.version = 11 : i64} {
  func.func @rvtdcnn_kernel(%arg0: i32, %arg1: memref<8x20xbf16, #tpu.memory_space<vmem>>, %arg2: memref<20x18xbf16, #tpu.memory_space<vmem>>, %arg3: memref<18x2xbf16, #tpu.memory_space<vmem>>, %arg4: memref<1x20xf32, #tpu.memory_space<vmem>>, %arg5: memref<8x2xf32, #tpu.memory_space<vmem>>) attributes {dimension_semantics = [#tpu.dimension_semantics<parallel>], iteration_bounds = array<i64: 1>, scalar_prefetch = 0 : i64, scratch_operands = 0 : i64, tpu.core_type = #tpu.core_type<tc>, window_params = [{transform_indices = @transform_0, window_bounds = array<i64: 8, 20>}, {pipeline_mode = #tpu.pipeline_mode<synchronous>, transform_indices = @transform_1, window_bounds = array<i64: 20, 18>}, {pipeline_mode = #tpu.pipeline_mode<synchronous>, transform_indices = @transform_2, window_bounds = array<i64: 18, 2>}, {pipeline_mode = #tpu.pipeline_mode<synchronous>, transform_indices = @transform_3, window_bounds = array<i64: 1, 20>}, {transform_indices = @transform_4, window_bounds = array<i64: 8, 2>}]} {
    %c0 = arith.constant 0 : index
    %c0_0 = arith.constant 0 : index
    %0 = vector.load %arg1[%c0, %c0_0] : memref<8x20xbf16, #tpu.memory_space<vmem>>, vector<8x20xbf16>
    %c0_1 = arith.constant 0 : index
    %c0_2 = arith.constant 0 : index
    %1 = vector.load %arg2[%c0_1, %c0_2] : memref<20x18xbf16, #tpu.memory_space<vmem>>, vector<20x18xbf16>
    %cst = arith.constant dense<0.000000e+00> : vector<8x18xf32>
    %2 = tpu.matmul %0, %1, %cst {dimension_numbers = #tpu.dot_dimension_numbers<[1], [0], [0], [1], [0, 0, 1, 1], [], []>} : vector<8x20xbf16>, vector<20x18xbf16>, vector<8x18xf32> -> vector<8x18xf32>
    %c0_3 = arith.constant 0 : index
    %c0_4 = arith.constant 0 : index
    %3 = vector.load %arg4[%c0_3, %c0_4] : memref<1x20xf32, #tpu.memory_space<vmem>>, vector<1x18xf32>
    %4 = vector.broadcast %3 : vector<1x18xf32> to vector<8x18xf32>
    %5 = arith.addf %2, %4 : vector<8x18xf32>
    %6 = math.tanh %5 : vector<8x18xf32>
    %7 = arith.truncf %6 : vector<8x18xf32> to vector<8x18xbf16>
    %c0_5 = arith.constant 0 : index
    %c0_6 = arith.constant 0 : index
    %8 = vector.load %arg3[%c0_5, %c0_6] : memref<18x2xbf16, #tpu.memory_space<vmem>>, vector<18x2xbf16>
    %cst_7 = arith.constant dense<0.000000e+00> : vector<8x2xf32>
    %9 = tpu.matmul %7, %8, %cst_7 {dimension_numbers = #tpu.dot_dimension_numbers<[1], [0], [0], [1], [0, 0, 1, 1], [], []>} : vector<8x18xbf16>, vector<18x2xbf16>, vector<8x2xf32> -> vector<8x2xf32>
    %c0_8 = arith.constant 0 : index
    %c18 = arith.constant 18 : index
    %10 = vector.load %arg4[%c0_8, %c18] : memref<1x20xf32, #tpu.memory_space<vmem>>, vector<1x2xf32>
    %11 = vector.broadcast %10 : vector<1x2xf32> to vector<8x2xf32>
    %12 = arith.addf %9, %11 : vector<8x2xf32>
    %c0_9 = arith.constant 0 : index
    %c0_10 = arith.constant 0 : index
    %13 = vector.load %arg5[%c0_9, %c0_10] : memref<8x2xf32, #tpu.memory_space<vmem>>, vector<8x2xf32>
    tpu.vector_store %arg5[%c0_9, %c0_10], %12 {strides = array<i32>} : memref<8x2xf32, #tpu.memory_space<vmem>>, vector<8x2xf32>,
    return
  }
  func.func @transform_0(%arg0: i32) -> (i32, i32) {
    %c0_i32 = arith.constant 0 : i32
    %c0_i32_0 = arith.constant 0 : i32
    return %arg0, %c0_i32 : i32, i32
  }
  func.func @transform_1(%arg0: i32) -> (i32, i32) {
    %c0_i32 = arith.constant 0 : i32
    %c0_i32_0 = arith.constant 0 : i32
    %c0_i32_1 = arith.constant 0 : i32
    return %c0_i32, %c0_i32_0 : i32, i32
  }
  func.func @transform_2(%arg0: i32) -> (i32, i32) {
    %c0_i32 = arith.constant 0 : i32
    %c0_i32_0 = arith.constant 0 : i32
    %c0_i32_1 = arith.constant 0 : i32
    return %c0_i32, %c0_i32_0 : i32, i32
  }
  func.func @transform_3(%arg0: i32) -> (i32, i32) {
    %c0_i32 = arith.constant 0 : i32
    %c0_i32_0 = arith.constant 0 : i32
    %c0_i32_1 = arith.constant 0 : i32
    return %c0_i32, %c0_i32_0 : i32, i32
  }
  func.func @transform_4(%arg0: i32) -> (i32, i32) {
    %c0_i32 = arith.constant 0 : i32
    %c0_i32_0 = arith.constant 0 : i32
    return %arg0, %c0_i32 : i32, i32
  }
}

</mosaic_0001>

<llo_original>
// kernel: rvtdcnn_forward.1
$region0: #{rvtdcnn_forward.1}
  #allocation0 [shape = 'u32[]', space=smem, size = 0x4, offset = 0x4, fixed_abs, tag = 'smem constant byte address 0x4 - core index']
  #allocation1 [shape = 'u32[144,128]{1,0:T(1,128)}', space=vmem, size = 0x12000, scoped, tag = 'internal scratch']
  %s0 = inlined_call_operand.vmem [shape: bf16[8,20], index: 0, kind: input, shape index: {}]
  %s1 = inlined_call_operand.vmem [shape: bf16[20,18], index: 1, kind: input, shape index: {}]
  %s2 = inlined_call_operand.vmem [shape: bf16[18,2], index: 2, kind: input, shape index: {}]
  %s3 = inlined_call_operand.vmem [shape: f32[1,20], index: 3, kind: input, shape index: {}]
  %s4 = inlined_call_operand.vmem [shape: f32[8,2], index: 4, kind: output, shape index: {}]
  %s5 = sld [smem:[#allocation0]]
  $region26: #{rvtdcnn_forward.1} parent=0
    _
  %s7 = ssub.s32 1, %s5
  %s8 = scalar_select 0, %s7, %s5
  // Predicated region
  $region2: #{rvtdcnn_forward.1} parent=0 // pred_check
    _
  $region3: #{rvtdcnn_forward.1} parent=0 // pred_check_branch
    %10 = sbr.rel (0) target = $region5
  $region4: #{rvtdcnn_forward.1} parent=0 // pred_region
    _
  $region5: #{rvtdcnn_forward.1} parent=0 // pred_fallthru
    _
  // Predicated region
  $region6: #{rvtdcnn_forward.1} parent=0 // pred_check
    _
  $region7: #{rvtdcnn_forward.1} parent=0 // pred_check_branch
    %12 = sbr.rel (0) target = $region9
  $region8: #{rvtdcnn_forward.1} parent=0 // pred_region
    _
  $region9: #{rvtdcnn_forward.1} parent=0 // pred_fallthru
    _
  // Predicated region
  $region10: #{rvtdcnn_forward.1} parent=0 // pred_check
    _
  $region11: #{rvtdcnn_forward.1} parent=0 // pred_check_branch
    %14 = sbr.rel (0) target = $region13
  $region12: #{rvtdcnn_forward.1} parent=0 // pred_region
    _
  $region13: #{rvtdcnn_forward.1} parent=0 // pred_fallthru
    _
  // Predicated region
  $region14: #{rvtdcnn_forward.1} parent=0 // pred_check
    _
  $region15: #{rvtdcnn_forward.1} parent=0 // pred_check_branch
    %16 = sbr.rel (0) target = $region17
  $region16: #{rvtdcnn_forward.1} parent=0 // pred_region
    _
  $region17: #{rvtdcnn_forward.1} parent=0 // pred_fallthru
    _
  %v18 = vld [vmem:[%s0] sm:$0xf]
  %v19 = vld [vmem:[%s1] sm:$0xf]
  %v20 = vld [vmem:[%s1 + $0x4] sm:$0xf]
  %v21 = vld [vmem:[%s1 + $0x8] sm:$0x3]
  %v22 = vld [vmem:[%s3] sm:$0x1]
  %v24 = vlaneseq
  %v25 = vshrl.u32 %v24, 7
  %v26 = vsub.s32 0, %v25
  %v27 = vrot.slane %v22, %v26
  %v32 = vunpack.c.l.b16 %v19
  %v33 = vunpack.c.l.b16 %v20
  %v34 = vunpack.c.l.b16 %v21
  %v35 = vpack.c.b16 %v33, %v32
  %v36 = vpack.c.b16 %v34, %v34
  %vm38 = vcmask 162816
  %v40 = vsel %vm38, %v18, 0
  %vm42 = vcmask 1041408
  %v44 = vsel %vm42, %v36, 0
  %46 = vmatprep.subr.bf16.mxu0 0
  %47 = vmatpush1.bf16.msra.mxu0 %v35
  %48 = vmatprep.subr.bf16.mxu0 0
  %49 = vmatpush1.bf16.msra.mxu0 %v44
  %50 = vmatprep.subr.bf16.mxu0 0
  %51 = vmatpush1.bf16.msra.mxu0 0
  %52 = vmatprep.subr.bf16.mxu0 0
  %53 = vmatpush1.bf16.msra.mxu0 0
  %54 = vmatprep.subr.bf16.mxu0 0
  %55 = vmatpush1.bf16.msra.mxu0 0
  %56 = vmatprep.subr.bf16.mxu0 0
  %57 = vmatpush1.bf16.msra.mxu0 0
  %58 = vmatprep.subr.bf16.mxu0 0
  %59 = vmatpush1.bf16.msra.mxu0 0
  %60 = vmatprep.subr.bf16.mxu0 0
  %61 = vmatpush1.bf16.msra.mxu0 0
  %62 = vmatprep.subr.bf16.mxu0 0
  %63 = vmatpush1.bf16.msra.mxu0 0
  %64 = vmatprep.subr.bf16.mxu0 0
  %65 = vmatpush1.bf16.msra.mxu0 0
  %66 = vmatprep.subr.bf16.mxu0 0
  %67 = vmatpush1.bf16.msra.mxu0 0
  %68 = vmatprep.subr.bf16.mxu0 0
  %69 = vmatpush1.bf16.msra.mxu0 0
  %70 = vmatprep.subr.bf16.mxu0 0
  %71 = vmatpush1.bf16.msra.mxu0 0
  %72 = vmatprep.subr.bf16.mxu0 0
  %73 = vmatpush1.bf16.msra.mxu0 0
  %74 = vmatprep.subr.bf16.mxu0 0
  %75 = vmatpush1.bf16.msra.mxu0 0
  %76 = vmatprep.subr.bf16.mxu0 0
  %77 = vmatpush1.bf16.msra.mxu0 0
  %78 = vmatprep.mubr.bf16.mxu0 0
  %79 = vmatmul.mubr.bf16.gmra.mrb[0].mxu0 %v40
  %v80 = vpop.f32.mrb[0].mxu0
  %v81 = vadd.f32 %v27, %v80
  %v82 = vpop.f32.mrb[0].mxu0
  %v83 = vpop.f32.mrb[0].mxu0
  %v84 = vpop.f32.mrb[0].mxu0
  %85 = vdwg.mxu0
  %v86 = vtanh.pop %v81
  %v87 = vpack.c.bf16 %v86, %v86
  %v88 = vld [vmem:[%s2] sm:$0xf]
  %v89 = vld [vmem:[%s2 + $0x4] sm:$0xf]
  %v90 = vld [vmem:[%s2 + $0x8] sm:$0x1]
  %v94 = vunpack.c.l.b16 %v88
  %v95 = vunpack.c.l.b16 %v89
  %v96 = vunpack.c.l.b16 %v90
  %v97 = vpack.c.b16 %v95, %v94
  %v98 = vpack.c.b16 %v96, %v96
  %100 = vrot.lane.b32.xlu0 %v27, 110
  %v101 = vpop.permute.xlu0 %100
  %vm103 = vcmask 146432
  %v105 = vsel %vm103, %v87, 0
  %vm107 = vcmask 1040384
  %v109 = vsel %vm107, %v98, 0
  %111 = vmatprep.subr.bf16.mxu0 0
  %112 = vmatpush1.bf16.msra.mxu0 %v97
  %113 = vmatprep.subr.bf16.mxu0 0
  %114 = vmatpush1.bf16.msra.mxu0 %v109
  %115 = vmatprep.subr.bf16.mxu0 0
  %116 = vmatpush1.bf16.msra.mxu0 0
  %117 = vmatprep.subr.bf16.mxu0 0
  %118 = vmatpush1.bf16.msra.mxu0 0
  %119 = vmatprep.subr.bf16.mxu0 0
  %120 = vmatpush1.bf16.msra.mxu0 0
  %121 = vmatprep.subr.bf16.mxu0 0
  %122 = vmatpush1.bf16.msra.mxu0 0
  %123 = vmatprep.subr.bf16.mxu0 0
  %124 = vmatpush1.bf16.msra.mxu0 0
  %125 = vmatprep.subr.bf16.mxu0 0
  %126 = vmatpush1.bf16.msra.mxu0 0
  %127 = vmatprep.subr.bf16.mxu0 0
  %128 = vmatpush1.bf16.msra.mxu0 0
  %129 = vmatprep.subr.bf16.mxu0 0
  %130 = vmatpush1.bf16.msra.mxu0 0
  %131 = vmatprep.subr.bf16.mxu0 0
  %132 = vmatpush1.bf16.msra.mxu0 0
  %133 = vmatprep.subr.bf16.mxu0 0
  %134 = vmatpush1.bf16.msra.mxu0 0
  %135 = vmatprep.subr.bf16.mxu0 0
  %136 = vmatpush1.bf16.msra.mxu0 0
  %137 = vmatprep.subr.bf16.mxu0 0
  %138 = vmatpush1.bf16.msra.mxu0 0
  %139 = vmatprep.subr.bf16.mxu0 0
  %140 = vmatpush1.bf16.msra.mxu0 0
  %141 = vmatprep.subr.bf16.mxu0 0
  %142 = vmatpush1.bf16.msra.mxu0 0
  %143 = vmatprep.mubr.bf16.mxu0 0
  %144 = vmatmul.mubr.bf16.gmra.mrb[0].mxu0 %v105
  %v145 = vpop.f32.mrb[0].mxu0
  %v146 = vadd.f32 %v101, %v145
  %v147 = vpop.f32.mrb[0].mxu0
  %v148 = vpop.f32.mrb[0].mxu0
  %v149 = vpop.f32.mrb[0].mxu0
  %150 = vdwg.mxu0
  %vm151 = vcmask 15360
  %152 = vst.msk [vmem:[%s4] sm:$0xff] %vm151, %v146
  // Predicated region
  $region18: #{rvtdcnn_forward.1} parent=0 // pred_check
    _
  $region19: #{rvtdcnn_forward.1} parent=0 // pred_check_branch
    %154 = sbr.rel (0) target = $region21
  $region20: #{rvtdcnn_forward.1} parent=0 // pred_region
    _
  $region21: #{rvtdcnn_forward.1} parent=0 // pred_fallthru
    _
  // Predicated region
  $region22: #{rvtdcnn_forward.1} parent=0 // pred_check
    _
  $region23: #{rvtdcnn_forward.1} parent=0 // pred_check_branch
    %156 = sbr.rel (0) target = $region25
  $region24: #{rvtdcnn_forward.1} parent=0 // pred_region
    _
  $region25: #{rvtdcnn_forward.1} parent=0 // pred_fallthru
    _

</llo_original>
